<compile_context>
chip_gen: v7x
topology: tpu7x:2x2x1
jax: 0.10.0
libtpu: 0.0.40
codegen_flags: <defaults>
</compile_context>

<pallas_src>
import functools
from typing import Any, Callable, Dict, List

import jax
import jax.numpy as jnp
from jax.experimental import pallas as pl
from jax.experimental.pallas import tpu as pltpu


def _cdiv(a: int, b: int) -> int:
    return -(-a // b)


def _round_up(x: int, m: int) -> int:
    return _cdiv(x, m) * m


# dtype-aware second-to-last-dim granularity: f32 -> 8, bf16 -> 16, int8/fp8 -> 32
_SUBLANE_FOR_ITEMSIZE = {8: 8, 4: 8, 2: 16, 1: 32}
_TARGET_BLOCK_BYTES = 2 * 1024 * 1024   # >=1 MiB blocks ~85% of HBM roofline
_MIN_GRID = 4                           # even, >=2: v7x megacore actually splits
_VMEM_LIMIT_BYTES = 32 * 1024 * 1024    # safe on v5e/v6e (128 MiB) and v7x (64 MiB)


def _choose_tiles(rows: int, lw: int, itemsize: int):
    """Pick (tile_rows, grid_n): big tiles, minimal tail pad, grid>=4 if possible."""
    sub = _SUBLANE_FOR_ITEMSIZE.get(int(itemsize), 8)
    ts_cap = max(sub, (_TARGET_BLOCK_BYTES // (lw * itemsize)) // sub * sub)
    n = max(_cdiv(rows, ts_cap), min(_MIN_GRID, _cdiv(rows, sub)))
    if n > 1 and n % 2:
        n += 1                       # even grid -> balanced split across 2 TCs (v7x)
    ts = _round_up(_cdiv(rows, n), sub)
    grid_n = _cdiv(rows, ts)
    return ts, grid_n


# ------------------------------ Pallas kernels ------------------------------ #
def _make_packed_kernel(eps: float, exact_f32: bool):
    def kernel(x_ref, gamma_ref, seg_ref, o_ref):
        # x_ref: (ts, lw), lw = pack*D; seg_ref: (lw, lw) block-diagonal 1/D mask;
        # gamma_ref: (1, lw) (gamma tiled `pack` times).
        x = x_ref[...].astype(jnp.float32)
        x2 = x * x
        seg = seg_ref[...]
        if exact_f32:
            # Split-product segmented reduction on the MXU: x2 = hi(bf16) + lo.
            # Two DEFAULT-precision passes give ~1e-6 rel accuracy regardless of
            # how this generation rounds f32 MXU operands; MXU has huge slack
            # under the HBM roofline, so the second pass is free.
            x2_hi = x2.astype(jnp.bfloat16).astype(jnp.float32)
            x2_lo = x2 - x2_hi
            ms = (jnp.dot(x2_hi, seg, preferred_element_type=jnp.float32)
                  + jnp.dot(x2_lo, seg, preferred_element_type=jnp.float32))
        else:
            ms = jnp.dot(x2, seg, preferred_element_type=jnp.float32)
        inv = jax.lax.rsqrt(ms + eps)                                   # EUP
        o_ref[...] = (x * inv * gamma_ref[...]).astype(o_ref.dtype)
    return kernel


def _make_plain_kernel(eps: float, inv_d: float):
    def kernel(x_ref, gamma_ref, o_ref):
        # x_ref: (ts, lw); lane reduction on the XLU, exact f32.
        x = x_ref[...].astype(jnp.float32)
        ss = jnp.sum(x * x, axis=-1, keepdims=True)                     # (ts, 1)
        inv = jax.lax.rsqrt(ss * inv_d + eps)                           # EUP
        o_ref[...] = (x * inv * gamma_ref[...]).astype(o_ref.dtype)
    return kernel


# ------------------------------- Per-sample op ------------------------------ #
class RMSNormPerSampleOp:
    """RMSNorm-with-scale per-sample op.

    Callable on a single (S, D) array; `apply_list` fuses a whole list of
    (S_i, D) arrays into ONE tiled pallas_call; `apply_stacked` runs directly
    on an already-stacked (R, D) buffer with zero concat/slice glue.
    """

    def __init__(self, gamma, eps: float = 1e-6):
        gamma = jnp.asarray(gamma, dtype=jnp.float32)
        assert gamma.ndim == 1
        self.D = int(gamma.shape[0])
        self.eps = float(eps)
        D = self.D

        # Lane-dense layout selection.
        if D % 128 == 0:
            self.pack, self.lw = 1, D                    # already lane-dense
        elif D < 128 and 128 % D == 0:
            self.pack, self.lw = 128 // D, 128           # pack 128/D samples/row
        else:
            self.pack, self.lw = 1, _round_up(D, 128)    # pad feature dim to 128k

        if self.pack > 1:
            self.gamma_row = jnp.tile(gamma.reshape(1, D), (1, self.pack))
            lane_seg = jnp.arange(self.lw, dtype=jnp.int32) // D
            # 1/D folded into the mask -> no separate full-tile multiply.
            self.seg = jnp.where(lane_seg[:, None] == lane_seg[None, :],
                                 jnp.float32(1.0 / D), jnp.float32(0.0))
        else:
            self.gamma_row = jnp.pad(gamma, (0, self.lw - D)).reshape(1, self.lw)
            self.seg = None

        self._call_cache = {}

    def __repr__(self):
        return (f"RMSNormPerSampleOp(D={self.D}, pack={self.pack}, "
                f"lw={self.lw}, eps={self.eps})")

    # ---- cached pallas_call builder ---- #
    def _get_call(self, rows_pad: int, ts: int, dtype):
        key = (rows_pad, ts, str(jnp.dtype(dtype)))
        fn = self._call_cache.get(key)
        if fn is not None:
            return fn

        lw = self.lw
        grid_n = rows_pad // ts
        itemsize = int(jnp.dtype(dtype).itemsize)
        packed = self.pack > 1
        exact = packed and jnp.dtype(dtype) == jnp.dtype(jnp.float32)

        if packed:
            kernel = _make_packed_kernel(self.eps, exact)
            in_specs = [
                pl.BlockSpec((ts, lw), lambda i: (i, 0)),   # x: tiled over rows
                pl.BlockSpec((1, lw), lambda i: (0, 0)),    # gamma: resident
                pl.BlockSpec((lw, lw), lambda i: (0, 0)),   # seg mask: resident
            ]
            mm_passes = 2 if exact else 1
            flops = 3 * rows_pad * lw + 2 * rows_pad * lw * lw * mm_passes
            trans = rows_pad * lw
            extra_bytes = lw * lw * 4 + lw * 4
        else:
            kernel = _make_plain_kernel(self.eps, 1.0 / self.D)
            in_specs = [
                pl.BlockSpec((ts, lw), lambda i: (i, 0)),
                pl.BlockSpec((1, lw), lambda i: (0, 0)),
            ]
            flops = 4 * rows_pad * lw
            trans = rows_pad
            extra_bytes = lw * 4

        cost = pl.CostEstimate(
            flops=int(flops),
            transcendentals=int(trans),
            bytes_accessed=int(2 * rows_pad * lw * itemsize + extra_bytes),
        )

        fn = pl.pallas_call(
            kernel,
            out_shape=jax.ShapeDtypeStruct((rows_pad, lw), dtype),
            grid=(grid_n,),
            in_specs=in_specs,
            out_specs=pl.BlockSpec((ts, lw), lambda i: (i, 0)),
            compiler_params=pltpu.CompilerParams(
                dimension_semantics=("parallel",),
                vmem_limit_bytes=_VMEM_LIMIT_BYTES),
            cost_estimate=cost,
        )
        self._call_cache[key] = fn
        return fn

    # ---- stacked (R, D) path: no concat / slice glue ---- #
    def apply_stacked(self, x2d: jnp.ndarray) -> jnp.ndarray:
        x2d = jnp.asarray(x2d)
        assert x2d.ndim == 2 and x2d.shape[1] == self.D, \
            "expected a stacked (R, D) buffer"
        R = int(x2d.shape[0])
        if R == 0:
            return x2d
        dtype = x2d.dtype
        itemsize = int(jnp.dtype(dtype).itemsize)
        pack, lw, D = self.pack, self.lw, self.D

        rows = _cdiv(R, pack)
        ts, grid_n = _choose_tiles(rows, lw, itemsize)
        rows_pad = grid_n * ts
        R_pad = rows_pad * pack

        xp = x2d
        if pack == 1 and lw > D:
            # Lane-dense padding of the feature dim so stores stay unmasked vst.
            xp = jnp.pad(xp, ((0, 0), (0, lw - D)))
        if R_pad != R:
            xp = jnp.pad(xp, ((0, R_pad - R), (0, 0)))      # zero rows -> sliced off
        big = xp.reshape(rows_pad, lw)

        fn = self._get_call(rows_pad, ts, dtype)
        if pack > 1:
            out = fn(big, self.gamma_row, self.seg)
        else:
            out = fn(big, self.gamma_row)

        out = out.reshape(R_pad, D) if pack > 1 else out[:, :D]
        return out[:R]

    # ---- fused path over a whole list (one pallas_call) ---- #
    def apply_list(self, x_list: List[jnp.ndarray]) -> List[jnp.ndarray]:
        if len(x_list) == 0:
            return []
        D = self.D
        dtype = jnp.asarray(x_list[0]).dtype
        lens = []
        for x in x_list:
            x = jnp.asarray(x)
            assert x.ndim == 2 and x.shape[1] == D, \
                "each list element must be (S, D) with matching D"
            assert x.dtype == dtype, "list elements must share a dtype"
            lens.append(int(x.shape[0]))
        R = sum(lens)
        if R == 0:
            return [jnp.asarray(x) for x in x_list]

        # TODO(synk): a fully zero-copy path would gather tiles straight from
        # the un-concatenated inputs via manual DMA; here one concat remains
        # (rows normalize independently, so no per-element padding is needed).
        flat = (jnp.asarray(x_list[0]) if len(x_list) == 1
                else jnp.concatenate([jnp.asarray(x) for x in x_list], axis=0))
        out_flat = self.apply_stacked(flat)

        results, off = [], 0
        for S in lens:
            results.append(out_flat[off:off + S])
            off += S
        return results

    # ---- single element (API parity with the PyTorch per_sample_op) ---- #
    def __call__(self, x: jnp.ndarray) -> jnp.ndarray:
        return self.apply_stacked(jnp.asarray(x))


# ----------------------------- Module equivalent ---------------------------- #
class PerSampleOp:
    """JAX/Pallas equivalent of flextok's PerSampleOp dict transform."""

    def __init__(self, read_key: str, write_key: str,
                 per_sample_op: Callable[[Any], Any]):
        self.read_key = read_key
        self.write_key = write_key
        self.per_sample_op = per_sample_op

    def __repr__(self):
        cls_name = self.__class__.__name__
        return (f'{cls_name}(\n  read_key={self.read_key!r},\n'
                f'  write_key={self.write_key!r},\n'
                f'  per_sample_op={self.per_sample_op!r}\n)')

    def __call__(self, data_dict: Dict[str, Any]) -> Dict[str, Any]:
        x_list: List[Any] = data_dict[self.read_key]
        op = self.per_sample_op
        if hasattr(op, "apply_list"):
            # Fused: one pallas_call for the whole list (same per-element
            # semantics as [op(e) for e in x_list]).
            out_list = op.apply_list(list(x_list))
        else:
            out_list = [op(element) for element in x_list]
        data_dict[self.write_key] = out_list
        return data_dict


# ----------------------------------- Demo ----------------------------------- #
if __name__ == "__main__":
    key = jax.random.PRNGKey(0)

    def ref_op(x, gamma, eps=1e-6):
        xf = x.astype(jnp.float32)
        ms = jnp.mean(xf * xf, axis=-1, keepdims=True)
        return (xf * jax.lax.rsqrt(ms + eps) * gamma[None, :]).astype(x.dtype)

    # --- Case 1: small D (=32) -> lane-packed path (pack = 4) --------------- #
    D = 32
    gamma = 1.0 + 0.01 * jnp.arange(D, dtype=jnp.float32)
    per_sample_op = RMSNormPerSampleOp(gamma)

    k0, k1, k2 = jax.random.split(key, 3)
    x_list = [
        jax.random.normal(k0, (8, D), dtype=jnp.float32),
        jax.random.normal(k1, (16, D), dtype=jnp.float32),   # varying S per sample
        jax.random.normal(k2, (8, D), dtype=jnp.float32),
    ]
    module = PerSampleOp(read_key="tokens", write_key="tokens_norm",
                         per_sample_op=per_sample_op)
    out_list = module({"tokens": x_list})["tokens_norm"]
    for o in out_list:
        jax.block_until_ready(o)
    for x, o in zip(x_list, out_list):
        r = ref_op(x, gamma)
        assert o.shape == x.shape and o.dtype == x.dtype
        assert jnp.allclose(o, r, atol=1e-5, rtol=1e-5)

    # --- Case 2: D = 128 -> plain lane-dense path (pack = 1), grid > 1 ------ #
    D2 = 128
    gamma2 = 1.0 + 0.001 * jnp.arange(D2, dtype=jnp.float32)
    op2 = RMSNormPerSampleOp(gamma2)
    k3, k4 = jax.random.split(k2)
    x_list2 = [
        jax.random.normal(k3, (8, D2), dtype=jnp.float32),
        jax.random.normal(k4, (24, D2), dtype=jnp.float32),
    ]
    out_list2 = PerSampleOp("feats", "feats_norm", op2)({"feats": x_list2})["feats_norm"]
    for o in out_list2:
        jax.block_until_ready(o)
    for x, o in zip(x_list2, out_list2):
        r = ref_op(x, gamma2)
        assert o.shape == x.shape and o.dtype == x.dtype
        assert jnp.allclose(o, r, atol=1e-5, rtol=1e-5)

    # --- Case 3: packed path, ragged lengths + tail padding + grid > 1 ------ #
    k5, k6 = jax.random.split(k4)
    x_list3 = [
        jax.random.normal(k5, (100, D), dtype=jnp.float32),
        jax.random.normal(k6, (7, D), dtype=jnp.float32),    # not a multiple of pack
    ]
    out_list3 = PerSampleOp("tok", "tok_norm", per_sample_op)({"tok": x_list3})["tok_norm"]
    for o in out_list3:
        jax.block_until_ready(o)
    for x, o in zip(x_list3, out_list3):
        r = ref_op(x, gamma)
        assert o.shape == x.shape and o.dtype == x.dtype
        assert jnp.allclose(o, r, atol=1e-5, rtol=1e-5)

    print("KERNEL_OK")
</pallas_src>

<mosaic_0001>
module attributes {stable_mosaic.version = 11 : i64} {
  func.func @kernel(%arg0: i32, %arg1: memref<8x128xf32, #tpu.memory_space<vmem>>, %arg2: memref<1x128xf32, #tpu.memory_space<vmem>>, %arg3: memref<128x128xf32, #tpu.memory_space<vmem>>, %arg4: memref<8x128xf32, #tpu.memory_space<vmem>>) attributes {dimension_semantics = [#tpu.dimension_semantics<parallel>], iteration_bounds = array<i64: 1>, scalar_prefetch = 0 : i64, scratch_operands = 0 : i64, tpu.core_type = #tpu.core_type<tc>, window_params = [{transform_indices = @transform_0, window_bounds = array<i64: 8, 128>}, {pipeline_mode = #tpu.pipeline_mode<synchronous>, transform_indices = @transform_1, window_bounds = array<i64: 1, 128>}, {pipeline_mode = #tpu.pipeline_mode<synchronous>, transform_indices = @transform_2, window_bounds = array<i64: 128, 128>}, {transform_indices = @transform_3, window_bounds = array<i64: 8, 128>}]} {
    %c0 = arith.constant 0 : index
    %c0_0 = arith.constant 0 : index
    %0 = vector.load %arg1[%c0, %c0_0] : memref<8x128xf32, #tpu.memory_space<vmem>>, vector<8x128xf32>
    %1 = arith.mulf %0, %0 : vector<8x128xf32>
    %c0_1 = arith.constant 0 : index
    %c0_2 = arith.constant 0 : index
    %2 = vector.load %arg3[%c0_1, %c0_2] : memref<128x128xf32, #tpu.memory_space<vmem>>, vector<128x128xf32>
    %3 = arith.truncf %1 : vector<8x128xf32> to vector<8x128xbf16>
    %4 = arith.extf %3 : vector<8x128xbf16> to vector<8x128xf32>
    %5 = arith.subf %1, %4 : vector<8x128xf32>
    %cst = arith.constant dense<0.000000e+00> : vector<8x128xf32>
    %6 = tpu.matmul %4, %2, %cst {dimension_numbers = #tpu.dot_dimension_numbers<[1], [0], [0], [1], [0, 0, 1, 1], [], []>} : vector<8x128xf32>, vector<128x128xf32>, vector<8x128xf32> -> vector<8x128xf32>
    %cst_3 = arith.constant dense<0.000000e+00> : vector<8x128xf32>
    %7 = tpu.matmul %5, %2, %cst_3 {dimension_numbers = #tpu.dot_dimension_numbers<[1], [0], [0], [1], [0, 0, 1, 1], [], []>} : vector<8x128xf32>, vector<128x128xf32>, vector<8x128xf32> -> vector<8x128xf32>
    %8 = arith.addf %6, %7 : vector<8x128xf32>
    %cst_4 = arith.constant 9.99999997E-7 : f32
    %9 = vector.broadcast %cst_4 : f32 to vector<8x128xf32>
    %10 = arith.addf %8, %9 : vector<8x128xf32>
    %11 = math.rsqrt %10 : vector<8x128xf32>
    %12 = arith.mulf %0, %11 : vector<8x128xf32>
    %c0_5 = arith.constant 0 : index
    %c0_6 = arith.constant 0 : index
    %13 = vector.load %arg2[%c0_5, %c0_6] : memref<1x128xf32, #tpu.memory_space<vmem>>, vector<1x128xf32>
    %14 = vector.broadcast %13 : vector<1x128xf32> to vector<8x128xf32>
    %15 = arith.mulf %12, %14 : vector<8x128xf32>
    %c0_7 = arith.constant 0 : index
    %c0_8 = arith.constant 0 : index
    %16 = vector.load %arg4[%c0_7, %c0_8] : memref<8x128xf32, #tpu.memory_space<vmem>>, vector<8x128xf32>
    tpu.vector_store %arg4[%c0_7, %c0_8], %15 {strides = array<i32>} : memref<8x128xf32, #tpu.memory_space<vmem>>, vector<8x128xf32>,
    return
  }
  func.func @transform_0(%arg0: i32) -> (i32, i32) {
    %c0_i32 = arith.constant 0 : i32
    %c0_i32_0 = arith.constant 0 : i32
    return %arg0, %c0_i32 : i32, i32
  }
  func.func @transform_1(%arg0: i32) -> (i32, i32) {
    %c0_i32 = arith.constant 0 : i32
    %c0_i32_0 = arith.constant 0 : i32
    %c0_i32_1 = arith.constant 0 : i32
    return %c0_i32, %c0_i32_0 : i32, i32
  }
  func.func @transform_2(%arg0: i32) -> (i32, i32) {
    %c0_i32 = arith.constant 0 : i32
    %c0_i32_0 = arith.constant 0 : i32
    %c0_i32_1 = arith.constant 0 : i32
    return %c0_i32, %c0_i32_0 : i32, i32
  }
  func.func @transform_3(%arg0: i32) -> (i32, i32) {
    %c0_i32 = arith.constant 0 : i32
    %c0_i32_0 = arith.constant 0 : i32
    return %arg0, %c0_i32 : i32, i32
  }
}

</mosaic_0001>

<llo_original>
// kernel: tpu_custom_call.1
$region0: #{tpu_custom_call.1}
  #allocation0 [shape = 'u32[]', space=smem, size = 0x4, offset = 0x4, fixed_abs, tag = 'smem constant byte address 0x4 - core index']
  #allocation1 [shape = 'u32[144,128]{1,0:T(1,128)}', space=vmem, size = 0x12000, scoped, tag = 'internal scratch']
  %s0 = inlined_call_operand.hbm [shape: f32[8,128], index: 0, kind: input, shape index: {}]
  %s1 = inlined_call_operand.vmem [shape: f32[1,128], index: 1, kind: input, shape index: {}]
  %s2 = inlined_call_operand.hbm [shape: f32[128,128], index: 2, kind: input, shape index: {}]
  %s3 = inlined_call_operand.hbm [shape: f32[8,128], index: 3, kind: output, shape index: {}]
  %s4 = sld [smem:[#allocation0]]
  $region30: #{tpu_custom_call.1} parent=0
    _
  %s6 = ssub.s32 1, %s4
  %s7 = scalar_select 0, %s6, %s4
  $region1: #{tpu_custom_call.1} parent=0
    #allocation2 [shape = 'u8[4096]{0}', space=vmem, size = 0x1000, scoped, tag = 'input window, operand 0, single buffered']
    #allocation3 [shape = 's32[1]{0}', space=sflag, size = 0x4, scoped, tag = 'scoped memory for tpu_custom_call.1']
    #allocation4 [shape = 's32[1]{0}', space=sflag, size = 0x4, scoped, tag = 'scoped memory for tpu_custom_call.1']
    #allocation5 [shape = 'u8[65536]{0}', space=vmem, size = 0x10000, scoped, tag = 'input window, operand 2, single buffered']
    #allocation6 [shape = 's32[1]{0}', space=sflag, size = 0x4, scoped, tag = 'scoped memory for tpu_custom_call.1']
    #allocation7 [shape = 'u8[4096]{0}', space=vmem, size = 0x1000, scoped, tag = 'output window, operand 0, single buffered']
    %8 = vsyncpa [#allocation3], 0
    %9 = vsyncpa [#allocation6], 0
    %10 = vsyncpa [#allocation4], 0
    // Predicated region
    $region2: #{tpu_custom_call.1} parent=1 // pred_check
      _
    $region3: #{tpu_custom_call.1} parent=1 // pred_check_branch
      %12 = sbr.rel (0) target = $region5
    $region4: #{tpu_custom_call.1} parent=1 // pred_region
      %s14 = ssub.s32 128, 128
      %15 = vsyncadd [#allocation3], %s14
      %s17 = sshll.u32 [#allocation2], 4
      %s18 = int_to_ptr.vmem [resolvable:$true] %s17
      %20 = dma.hbm_to_vmem [thread:$0]  %s0, 128, %s18, [#allocation3]
    $region5: #{tpu_custom_call.1} parent=1 // pred_fallthru
      _
    // Predicated region
    $region6: #{tpu_custom_call.1} parent=1 // pred_check
      _
    $region7: #{tpu_custom_call.1} parent=1 // pred_check_branch
      %22 = sbr.rel (0) target = $region9
    $region8: #{tpu_custom_call.1} parent=1 // pred_region
      _
    $region9: #{tpu_custom_call.1} parent=1 // pred_fallthru
      _
    // Predicated region
    $region10: #{tpu_custom_call.1} parent=1 // pred_check
      _
    $region11: #{tpu_custom_call.1} parent=1 // pred_check_branch
      %24 = sbr.rel (0) target = $region13
    $region12: #{tpu_custom_call.1} parent=1 // pred_region
      %s26 = ssub.s32 2048, 2048
      %27 = vsyncadd [#allocation6], %s26
      %s28 = sshll.u32 [#allocation5], 4
      %s29 = int_to_ptr.vmem [resolvable:$true] %s28
      %34 = dma.hbm_to_vmem [thread:$0]  %s2, 2048, %s29, [#allocation6], 128, 128, 8
    $region13: #{tpu_custom_call.1} parent=1 // pred_fallthru
      _
    // Predicated region
    $region14: #{tpu_custom_call.1} parent=1 // pred_check
      _
    $region15: #{tpu_custom_call.1} parent=1 // pred_check_branch
      %36 = sbr.rel (0) target = $region17
    $region16: #{tpu_custom_call.1} parent=1 // pred_region
      %37 = dma.done [#allocation3], 128
    $region17: #{tpu_custom_call.1} parent=1 // pred_fallthru
      _
    // Predicated region
    $region18: #{tpu_custom_call.1} parent=1 // pred_check
      _
    $region19: #{tpu_custom_call.1} parent=1 // pred_check_branch
      %39 = sbr.rel (0) target = $region21
    $region20: #{tpu_custom_call.1} parent=1 // pred_region
      %40 = dma.done [#allocation6], 2048
    $region21: #{tpu_custom_call.1} parent=1 // pred_fallthru
      _
    %v41 = vld [vmem:[#allocation2] sm:$0xff]
    %v42 = vmul.f32 %v41, %v41
    %v43 = vld [vmem:[#allocation5] sm:$0xff]
    %v44 = vld [vmem:[#allocation5 + $0x8] sm:$0xff]
    %v45 = vld [vmem:[#allocation5 + $0x10] sm:$0xff]
    %v46 = vld [vmem:[#allocation5 + $0x18] sm:$0xff]
    %v47 = vld [vmem:[#allocation5 + $0x20] sm:$0xff]
    %v48 = vld [vmem:[#allocation5 + $0x28] sm:$0xff]
    %v49 = vld [vmem:[#allocation5 + $0x30] sm:$0xff]
    %v50 = vld [vmem:[#allocation5 + $0x38] sm:$0xff]
    %v51 = vld [vmem:[#allocation5 + $0x40] sm:$0xff]
    %v52 = vld [vmem:[#allocation5 + $0x48] sm:$0xff]
    %v53 = vld [vmem:[#allocation5 + $0x50] sm:$0xff]
    %v54 = vld [vmem:[#allocation5 + $0x58] sm:$0xff]
    %v55 = vld [vmem:[#allocation5 + $0x60] sm:$0xff]
    %v56 = vld [vmem:[#allocation5 + $0x68] sm:$0xff]
    %v57 = vld [vmem:[#allocation5 + $0x70] sm:$0xff]
    %v58 = vld [vmem:[#allocation5 + $0x78] sm:$0xff]
    %v59 = vpack.c.bf16 %v42, %v42
    %v60 = vunpack.c.l.bf16 %v59
    %v61 = vsub.f32 %v42, %v60
    %62 = vmatprep.subr.mxu0 0.0
    %63 = vmatpush1.msra.mxu0 %v43
    %64 = vmatprep.subr.mxu0 0.0
    %65 = vmatpush1.msra.mxu0 %v44
    %66 = vmatprep.subr.mxu0 0.0
    %67 = vmatpush1.msra.mxu0 %v45
    %68 = vmatprep.subr.mxu0 0.0
    %69 = vmatpush1.msra.mxu0 %v46
    %70 = vmatprep.subr.mxu0 0.0
    %71 = vmatpush1.msra.mxu0 %v47
    %72 = vmatprep.subr.mxu0 0.0
    %73 = vmatpush1.msra.mxu0 %v48
    %74 = vmatprep.subr.mxu0 0.0
    %75 = vmatpush1.msra.mxu0 %v49
    %76 = vmatprep.subr.mxu0 0.0
    %77 = vmatpush1.msra.mxu0 %v50
    %78 = vmatprep.subr.mxu0 0.0
    %79 = vmatpush1.msra.mxu0 %v51
    %80 = vmatprep.subr.mxu0 0.0
    %81 = vmatpush1.msra.mxu0 %v52
    %82 = vmatprep.subr.mxu0 0.0
    %83 = vmatpush1.msra.mxu0 %v53
    %84 = vmatprep.subr.mxu0 0.0
    %85 = vmatpush1.msra.mxu0 %v54
    %86 = vmatprep.subr.mxu0 0.0
    %87 = vmatpush1.msra.mxu0 %v55
    %88 = vmatprep.subr.mxu0 0.0
    %89 = vmatpush1.msra.mxu0 %v56
    %90 = vmatprep.subr.mxu0 0.0
    %91 = vmatpush1.msra.mxu0 %v57
    %92 = vmatprep.subr.mxu0 0.0
    %93 = vmatpush1.msra.mxu0 %v58
    %94 = vmatprep.subr.mxu0 0.0
    %95 = vmatpush1.msra.mxu0 0.0
    %96 = vmatprep.subr.mxu0 0.0
    %97 = vmatpush1.msra.mxu0 0.0
    %98 = vmatprep.subr.mxu0 0.0
    %99 = vmatpush1.msra.mxu0 0.0
    %100 = vmatprep.subr.mxu0 0.0
    %101 = vmatpush1.msra.mxu0 0.0
    %102 = vmatprep.subr.mxu0 0.0
    %103 = vmatpush1.msra.mxu0 0.0
    %104 = vmatprep.subr.mxu0 0.0
    %105 = vmatpush1.msra.mxu0 0.0
    %106 = vmatprep.subr.mxu0 0.0
    %107 = vmatpush1.msra.mxu0 0.0
    %108 = vmatprep.subr.mxu0 0.0
    %109 = vmatpush1.msra.mxu0 0.0
    %110 = vmatprep.subr.mxu0 0.0
    %111 = vmatpush1.msra.mxu0 0.0
    %112 = vmatprep.subr.mxu0 0.0
    %113 = vmatpush1.msra.mxu0 0.0
    %114 = vmatprep.subr.mxu0 0.0
    %115 = vmatpush1.msra.mxu0 0.0
    %116 = vmatprep.subr.mxu0 0.0
    %117 = vmatpush1.msra.mxu0 0.0
    %118 = vmatprep.subr.mxu0 0.0
    %119 = vmatpush1.msra.mxu0 0.0
    %120 = vmatprep.subr.mxu0 0.0
    %121 = vmatpush1.msra.mxu0 0.0
    %122 = vmatprep.subr.mxu0 0.0
    %123 = vmatpush1.msra.mxu0 0.0
    %124 = vmatprep.subr.mxu0 0.0
    %125 = vmatpush1.msra.mxu0 0.0
    %126 = vmatprep.mubr.f32.mxu0 0.0
    %127 = vmatmul.mubr.f32.gmra.mrb[0].mxu0 %v61
    %v128 = vpop.f32.mrb[0].mxu0
    %v129 = vadd.f32 0.0, %v128
    %v130 = vpop.f32.mrb[0].mxu0
    %131 = vdwg.mxu0
    %132 = vmatprep.subr.mxu0 0.0
    %133 = vmatpush1.msra.mxu0 %v43
    %134 = vmatprep.subr.mxu0 0.0
    %135 = vmatpush1.msra.mxu0 %v44
    %136 = vmatprep.subr.mxu0 0.0
    %137 = vmatpush1.msra.mxu0 %v45
    %138 = vmatprep.subr.mxu0 0.0
    %139 = vmatpush1.msra.mxu0 %v46
    %140 = vmatprep.subr.mxu0 0.0
    %141 = vmatpush1.msra.mxu0 %v47
    %142 = vmatprep.subr.mxu0 0.0
    %143 = vmatpush1.msra.mxu0 %v48
    %144 = vmatprep.subr.mxu0 0.0
    %145 = vmatpush1.msra.mxu0 %v49
    %146 = vmatprep.subr.mxu0 0.0
    %147 = vmatpush1.msra.mxu0 %v50
    %148 = vmatprep.subr.mxu0 0.0
    %149 = vmatpush1.msra.mxu0 %v51
    %150 = vmatprep.subr.mxu0 0.0
    %151 = vmatpush1.msra.mxu0 %v52
    %152 = vmatprep.subr.mxu0 0.0
    %153 = vmatpush1.msra.mxu0 %v53
    %154 = vmatprep.subr.mxu0 0.0
    %155 = vmatpush1.msra.mxu0 %v54
    %156 = vmatprep.subr.mxu0 0.0
    %157 = vmatpush1.msra.mxu0 %v55
    %158 = vmatprep.subr.mxu0 0.0
    %159 = vmatpush1.msra.mxu0 %v56
    %160 = vmatprep.subr.mxu0 0.0
    %161 = vmatpush1.msra.mxu0 %v57
    %162 = vmatprep.subr.mxu0 0.0
    %163 = vmatpush1.msra.mxu0 %v58
    %164 = vmatprep.subr.mxu0 0.0
    %165 = vmatpush1.msra.mxu0 0.0
    %166 = vmatprep.subr.mxu0 0.0
    %167 = vmatpush1.msra.mxu0 0.0
    %168 = vmatprep.subr.mxu0 0.0
    %169 = vmatpush1.msra.mxu0 0.0
    %170 = vmatprep.subr.mxu0 0.0
    %171 = vmatpush1.msra.mxu0 0.0
    %172 = vmatprep.subr.mxu0 0.0
    %173 = vmatpush1.msra.mxu0 0.0
    %174 = vmatprep.subr.mxu0 0.0
    %175 = vmatpush1.msra.mxu0 0.0
    %176 = vmatprep.subr.mxu0 0.0
    %177 = vmatpush1.msra.mxu0 0.0
    %178 = vmatprep.subr.mxu0 0.0
    %179 = vmatpush1.msra.mxu0 0.0
    %180 = vmatprep.subr.mxu0 0.0
    %181 = vmatpush1.msra.mxu0 0.0
    %182 = vmatprep.subr.mxu0 0.0
    %183 = vmatpush1.msra.mxu0 0.0
    %184 = vmatprep.subr.mxu0 0.0
    %185 = vmatpush1.msra.mxu0 0.0
    %186 = vmatprep.subr.mxu0 0.0
    %187 = vmatpush1.msra.mxu0 0.0
    %188 = vmatprep.subr.mxu0 0.0
    %189 = vmatpush1.msra.mxu0 0.0
    %190 = vmatprep.subr.mxu0 0.0
    %191 = vmatpush1.msra.mxu0 0.0
    %192 = vmatprep.subr.mxu0 0.0
    %193 = vmatpush1.msra.mxu0 0.0
    %194 = vmatprep.subr.mxu0 0.0
    %195 = vmatpush1.msra.mxu0 0.0
    %196 = vmatprep.mubr.f32.mxu0 0.0
    %197 = vmatmul.mubr.f32.gmra.mrb[0].mxu0 %v60
    %v198 = vpop.f32.mrb[0].mxu0
    %v199 = vadd.f32 %v129, %v198
    %v200 = vpop.f32.mrb[0].mxu0
    %201 = vdwg.mxu0
    %v202 = vadd.f32 %v199, 1e-06
    %v203 = vrsqrt.pop %v202
    %v204 = vmul.f32 %v41, %v203
    %v205 = vld [vmem:[%s1] sm:$0x1]
    %v207 = vlaneseq
    %v208 = vshrl.u32 %v207, 7
    %v209 = vsub.s32 0, %v208
    %v210 = vrot.slane %v205, %v209
    %v212 = vmul.f32 %v204, %v210
    %213 = vst [vmem:[#allocation7] sm:$0xff] %v212
    // Predicated region
    $region22: #{tpu_custom_call.1} parent=1 // pred_check
      _
    $region23: #{tpu_custom_call.1} parent=1 // pred_check_branch
      %215 = sbr.rel (0) target = $region25
    $region24: #{tpu_custom_call.1} parent=1 // pred_region
      %s217 = ssub.s32 128, 128
      %218 = vsyncadd [#allocation4], %s217
      %s220 = sshll.u32 [#allocation7], 4
      %s221 = int_to_ptr.vmem [resolvable:$true] %s220
      %223 = dma.vmem_to_hbm [thread:$0]  %s221, 128, %s3, [#allocation4]
    $region25: #{tpu_custom_call.1} parent=1 // pred_fallthru
      _
    // Predicated region
    $region26: #{tpu_custom_call.1} parent=1 // pred_check
      _
    $region27: #{tpu_custom_call.1} parent=1 // pred_check_branch
      %225 = sbr.rel (0) target = $region29
    $region28: #{tpu_custom_call.1} parent=1 // pred_region
      %226 = dma.done [#allocation4], 128
    $region29: #{tpu_custom_call.1} parent=1 // pred_fallthru
      _
    %227 = vsyncpa [#allocation3], 1
    %228 = vsyncpa [#allocation6], 1
    %229 = vsyncpa [#allocation4], 1

</llo_original>
